<compile_context>
chip_gen: v6e
topology: v6e:2x2x1
jax: 0.10.0
libtpu: 0.0.40
codegen_flags: <defaults>
</compile_context>

<pallas_src>
import jax
import jax.numpy as jnp
from jax.experimental import pallas as pl
from jax.experimental.pallas import tpu as pltpu

_IN = 4                 # nn.Linear(4, 1)
_OUT = 1
_LANES = 128
_PACK = _LANES // _IN   # 32 batch rows packed into each 128-lane row


def _linear_kernel(b_ref, x_ref, w_ref, o_ref):
    # b_ref: (1,)        f32 bias in SMEM.
    # x_ref: (TR, 128)   input tile; each row = 32 batch rows x 4 features,
    #                    interleaved exactly as they sit in HBM (row-major).
    # w_ref: (128, 32)   de-interleave weight matrix, resident across steps:
    #                    w_ref[4*j + k, j] = W[0, k], zero elsewhere.
    # o_ref: (TR, 32)    output tile; o_ref[r, j] = y[32*r + j, 0].
    acc = jnp.dot(x_ref[...], w_ref[...], preferred_element_type=jnp.float32)
    o_ref[...] = (acc + b_ref[0]).astype(o_ref.dtype)


def _linear_pallas(x_rs, w_mat, b_s, block_rows):
    rows = x_rs.shape[0]
    if rows <= block_rows:
        br = rows                          # single block == full array dim
    else:
        br = max(8, (block_rows // 8) * 8)  # keep sublane dim a multiple of 8

    return pl.pallas_call(
        _linear_kernel,
        out_shape=jax.ShapeDtypeStruct((rows, _PACK), x_rs.dtype),
        grid=(pl.cdiv(rows, br),),
        in_specs=[
            pl.BlockSpec(memory_space=pltpu.MemorySpace.SMEM),   # bias (1,)
            pl.BlockSpec((br, _LANES), lambda i: (i, 0)),        # x tile
            pl.BlockSpec((_LANES, _PACK), lambda i: (0, 0)),     # W_mat (same block every step)
        ],
        out_specs=pl.BlockSpec((br, _PACK), lambda i: (i, 0)),
        compiler_params=pltpu.CompilerParams(
            # Batch tiles are independent -> let the runtime shard them across
            # TensorCores on multi-TC parts (v7x).
            dimension_semantics=("parallel",),
        ),
    )(b_s, x_rs, w_mat)


def linear_forward(x, w, b, *, block_rows=4096, min_kernel_batch=32768):
    """PyTorch nn.Linear(4, 1) forward: y = x @ w.T + b.

    x: (B, 4) ; w: (1, 4) ; b: (1,)  ->  y: (B, 1)
    """
    B, in_features = x.shape
    out_features = w.shape[0]
    assert in_features == _IN and out_features == _OUT
    assert w.shape == (_OUT, _IN) and b.shape == (_OUT,)

    # Small-batch bypass: launch + per-step overhead dominates; let XLA fuse.
    if B < max(min_kernel_batch, _PACK):
        return (x @ w.T + b).astype(x.dtype)

    # Rows handled by the kernel must pack exactly into 128-lane rows.
    n_main = (B // _PACK) * _PACK
    x_main = x if n_main == B else x[:n_main]   # prefix slice only for ragged B

    # Contiguous (bitcast, free) reshape: (n_main, 4) -> (n_main/32, 128).
    x_rs = x_main.reshape(n_main // _PACK, _LANES)

    # (128, 32) de-interleave matrix: W_mat[4*j + k, j] = w[k], else 0.
    w_vec = w.reshape(_IN).astype(jnp.float32)
    w_mat = jnp.kron(jnp.eye(_PACK, dtype=jnp.float32),
                     w_vec.reshape(_IN, 1)).astype(x.dtype)      # (128, 32)
    b_s = b.reshape(_OUT).astype(jnp.float32)

    y_main = _linear_pallas(x_rs, w_mat, b_s, block_rows)        # (rows, 32)
    y_main = y_main.reshape(n_main, _OUT)                        # free reshape

    if n_main == B:
        return y_main
    # Ragged tail (< 32 rows): tiny jnp compute instead of re-padding all of x.
    y_tail = (x[n_main:] @ w.T + b).astype(x.dtype)
    return jnp.concatenate([y_main, y_tail], axis=0)


if __name__ == "__main__":
    key = jax.random.PRNGKey(0)
    k_x, k_w, k_b, k_x2 = jax.random.split(key, 4)

    in_features, out_features = 4, 1

    # Deterministic init matching nn.Linear default: U(-1/sqrt(IN), 1/sqrt(IN))
    bound = 1.0 / (in_features ** 0.5)
    w = jax.random.uniform(k_w, (out_features, in_features),
                           minval=-bound, maxval=bound, dtype=jnp.float32)
    b = jax.random.uniform(k_b, (out_features,),
                           minval=-bound, maxval=bound, dtype=jnp.float32)

    def ref(xx):
        # Elementwise f32 reference (avoids XLA matmul precision ambiguity).
        return (xx * w.reshape(1, in_features)).sum(axis=1, keepdims=True) + b

    # 1) Module-consistent tiny batch (B=8): goes through the small-batch bypass.
    x = jax.random.normal(k_x, (8, in_features), dtype=jnp.float32)
    y = linear_forward(x, w, b)
    jax.block_until_ready(y)
    assert y.shape == (8, out_features)
    assert jnp.allclose(y, ref(x), atol=1e-4, rtol=1e-4)

    # 2) Larger batch forced through the Pallas kernel: multi-step grid,
    #    partial final block (20000/32 = 625 rows, block_rows=256) and a
    #    ragged %32 tail of 8 rows handled outside the kernel.
    x2 = jax.random.normal(k_x2, (20008, in_features), dtype=jnp.float32)
    y2 = linear_forward(x2, w, b, block_rows=256, min_kernel_batch=0)
    jax.block_until_ready(y2)
    assert y2.shape == (20008, out_features)
    assert jnp.allclose(y2, ref(x2), atol=1e-4, rtol=1e-4)

    print("KERNEL_OK")
</pallas_src>

<mosaic_0001>
module attributes {stable_mosaic.version = 11 : i64} {
  func.func @_linear_kernel(%arg0: i32, %arg1: memref<1xf32, #tpu.memory_space<smem>>, %arg2: memref<256x128xf32, #tpu.memory_space<vmem>>, %arg3: memref<128x32xf32, #tpu.memory_space<vmem>>, %arg4: memref<256x32xf32, #tpu.memory_space<vmem>>) attributes {dimension_semantics = [#tpu.dimension_semantics<parallel>], iteration_bounds = array<i64: 3>, scalar_prefetch = 0 : i64, scratch_operands = 0 : i64, tpu.core_type = #tpu.core_type<tc>, window_params = [{transform_indices = @transform_0, window_bounds = array<i64: 1>}, {transform_indices = @transform_1, window_bounds = array<i64: 256, 128>}, {pipeline_mode = #tpu.pipeline_mode<synchronous>, transform_indices = @transform_2, window_bounds = array<i64: 128, 32>}, {transform_indices = @transform_3, window_bounds = array<i64: 256, 32>}]} {
    %c0 = arith.constant 0 : index
    %c0_0 = arith.constant 0 : index
    %0 = vector.load %arg2[%c0, %c0_0] : memref<256x128xf32, #tpu.memory_space<vmem>>, vector<256x128xf32>
    %c0_1 = arith.constant 0 : index
    %c0_2 = arith.constant 0 : index
    %1 = vector.load %arg3[%c0_1, %c0_2] : memref<128x32xf32, #tpu.memory_space<vmem>>, vector<128x32xf32>
    %cst = arith.constant dense<0.000000e+00> : vector<256x32xf32>
    %2 = tpu.matmul %0, %1, %cst {dimension_numbers = #tpu.dot_dimension_numbers<[1], [0], [0], [1], [0, 0, 1, 1], [], []>} : vector<256x128xf32>, vector<128x32xf32>, vector<256x32xf32> -> vector<256x32xf32>
    %c0_3 = arith.constant 0 : index
    %3 = memref.load %arg1[%c0_3] : memref<1xf32, #tpu.memory_space<smem>>
    %4 = vector.broadcast %3 : f32 to vector<256x32xf32>
    %5 = arith.addf %2, %4 : vector<256x32xf32>
    %c0_4 = arith.constant 0 : index
    %c0_5 = arith.constant 0 : index
    %6 = vector.load %arg4[%c0_4, %c0_5] : memref<256x32xf32, #tpu.memory_space<vmem>>, vector<256x32xf32>
    tpu.vector_store %arg4[%c0_4, %c0_5], %5 {strides = array<i32>} : memref<256x32xf32, #tpu.memory_space<vmem>>, vector<256x32xf32>,
    return
  }
  func.func @transform_0(%arg0: i32) -> i32 {
    %c0_i32 = arith.constant 0 : i32
    %c0_i32_0 = arith.constant 0 : i32
    return %c0_i32 : i32
  }
  func.func @transform_1(%arg0: i32) -> (i32, i32) {
    %c0_i32 = arith.constant 0 : i32
    %c0_i32_0 = arith.constant 0 : i32
    return %arg0, %c0_i32 : i32, i32
  }
  func.func @transform_2(%arg0: i32) -> (i32, i32) {
    %c0_i32 = arith.constant 0 : i32
    %c0_i32_0 = arith.constant 0 : i32
    %c0_i32_1 = arith.constant 0 : i32
    return %c0_i32, %c0_i32_0 : i32, i32
  }
  func.func @transform_3(%arg0: i32) -> (i32, i32) {
    %c0_i32 = arith.constant 0 : i32
    %c0_i32_0 = arith.constant 0 : i32
    return %arg0, %c0_i32 : i32, i32
  }
}

</mosaic_0001>

<llo_original>
// kernel: tpu_custom_call.1
$region0: #{tpu_custom_call.1}
  #allocation0 [shape = 'u32[]', space=smem, size = 0x4, offset = 0x4, fixed_abs, tag = 'smem constant byte address 0x4 - core index']
  #allocation1 [shape = 'u32[144,128]{1,0:T(1,128)}', space=vmem, size = 0x12000, scoped, tag = 'internal scratch']
  #allocation2 [shape = 'f32[1]{0:T(128)S(6)}', space=smem, size = 0x200, scoped, tag = 'scoped memory for tpu_custom_call.1']
  %s0 = inlined_call_operand.<no memory space> [shape: f32[1], index: 0, kind: input, shape index: {}]
  %s1 = inlined_call_operand.hbm [shape: f32[625,128], index: 1, kind: input, shape index: {}]
  %s2 = inlined_call_operand.vmem [shape: f32[128,32], index: 2, kind: input, shape index: {}]
  %s3 = inlined_call_operand.vmem [shape: f32[625,32], index: 3, kind: output, shape index: {}]
  %s4 = sld [smem:[#allocation0]]
  $region97: #{tpu_custom_call.1} parent=0
    _
  %s6 = ssub.s32 1, %s4
  %s7 = scalar_select 0, %s6, %s4
  %8 = sst [smem:[#allocation2]] %s0
  $region1: #{tpu_custom_call.1} parent=0
    #allocation3 [shape = 'u8[262144]{0}', space=vmem, size = 0x40000, scoped, tag = 'input window, operand 1']
    #allocation4 [shape = 's32[2]{0}', space=sflag, size = 0x8, scoped, tag = 'scoped memory for tpu_custom_call.1']
    #allocation5 [shape = 'u8[262144]{0}', space=vmem, size = 0x40000, scoped, tag = 'output window, operand 0']
    %9 = vsyncpa [#allocation4], 0
    %s10 = scalar_lea.sflag [#allocation4], 1
    %11 = vsyncpa %s10, 0
    loop: start=0, step=1, limit=5
    $region2: #{tpu_custom_call.1} parent=1 // loop_pre_header
      _
    $region3: #{tpu_custom_call.1} parent=1 // loop_header
      %s13 = sphi 0, %s17
      %p14 = scmp.ge.s32.totalorder %s13, 5
      %s21 = sphi 0, %s21
      %s23 = sphi 0, %s21
      %s24 = sphi 0, %s23
      %s38 = sphi 0, %s24
      %s44 = sphi 0, %s46
      %s47 = sphi 0, %s44
      %s48 = sphi 0, %s47
      %s64 = sphi 0, %s48
      %s68 = sphi 0, %s68
      %s70 = sphi 0, %s68
      %s71 = sphi 0, %s70
      %s85 = sphi 0, %s71
      %s91 = sphi 0, %s93
      %s94 = sphi 0, %s91
      %s95 = sphi 0, %s94
      %s111 = sphi 0, %s95
    $region4: #{tpu_custom_call.1} parent=1 // loop_header_branch
      %16 = sbr.rel (%p14) target = $region8
    $region5: #{tpu_custom_call.1} parent=1 // loop_body
      %s18 = ssub.s32 %s13, 1
      %s19 = ssub.s32 %s13, 2
      %s20 = sadd.s32 %s13, 1
      %s22 = sadd.s32 %s21, 1
      %p25 = scmp.eq.s32.totalorder %s13, 2
      %p26 = scmp.ne.s32.totalorder %s21, %s23
      %p27 = scmp.eq.s32.totalorder %s13, 0
      %p28 = por %p26, %p27
      %p29 = scmp.ne.s32.totalorder %s21, %s23
      %p30 = scmp.eq.s32.totalorder %s18, 2
      %p31 = por %p29, %p30
      %p32 = scmp.ne.s32.totalorder %s23, %s24
      %p33 = scmp.eq.s32.totalorder %s18, 0
      %p34 = por %p32, %p33
      %p35 = scmp.ne.s32.totalorder %s23, %s24
      %p36 = scmp.eq.s32.totalorder %s19, 2
      %p37 = por %p35, %p36
      %p39 = scmp.ne.s32.totalorder %s24, %s38
      %p40 = scmp.eq.s32.totalorder %s19, 0
      %p41 = por %p39, %p40
      %s42 = ssub.s32 %s13, %s20
      %p43 = scmp.eq.s32.totalorder %s42, 0
      %s45 = sadd.s32 %s44, 1
      %s46 = scalar_select %p43, %s44, %s45
      %p49 = pneg %p43
      %p50 = scmp.eq.s32.totalorder %s13, 2
      %p51 = por %p49, %p50
      %p52 = scmp.ne.s32.totalorder %s44, %s47
      %p53 = scmp.eq.s32.totalorder %s13, 0
      %p54 = por %p52, %p53
      %p55 = scmp.ne.s32.totalorder %s44, %s47
      %p56 = scmp.eq.s32.totalorder %s18, 2
      %p57 = por %p55, %p56
      %p58 = scmp.ne.s32.totalorder %s47, %s48
      %p59 = scmp.eq.s32.totalorder %s18, 0
      %p60 = por %p58, %p59
      %p61 = scmp.ne.s32.totalorder %s47, %s48
      %p62 = scmp.eq.s32.totalorder %s19, 2
      %p63 = por %p61, %p62
      %p65 = scmp.ne.s32.totalorder %s48, %s64
      %p66 = scmp.eq.s32.totalorder %s19, 0
      %p67 = por %p65, %p66
      %s69 = sadd.s32 %s68, 1
      %p72 = scmp.eq.s32.totalorder %s13, 2
      %p73 = scmp.ne.s32.totalorder %s68, %s70
      %p74 = scmp.eq.s32.totalorder %s13, 0
      %p75 = por %p73, %p74
      %p76 = scmp.ne.s32.totalorder %s68, %s70
      %p77 = scmp.eq.s32.totalorder %s18, 2
      %p78 = por %p76, %p77
      %p79 = scmp.ne.s32.totalorder %s70, %s71
      %p80 = scmp.eq.s32.totalorder %s18, 0
      %p81 = por %p79, %p80
      %p82 = scmp.ne.s32.totalorder %s70, %s71
      %p83 = scmp.eq.s32.totalorder %s19, 2
      %p84 = por %p82, %p83
      %p86 = scmp.ne.s32.totalorder %s71, %s85
      %p87 = scmp.eq.s32.totalorder %s19, 0
      %p88 = por %p86, %p87
      %s89 = ssub.s32 %s13, %s20
      %p90 = scmp.eq.s32.totalorder %s89, 0
      %s92 = sadd.s32 %s91, 1
      %s93 = scalar_select %p90, %s91, %s92
      %p96 = pneg %p90
      %p97 = scmp.eq.s32.totalorder %s13, 2
      %p98 = por %p96, %p97
      %p99 = scmp.ne.s32.totalorder %s91, %s94
      %p100 = scmp.eq.s32.totalorder %s13, 0
      %p101 = por %p99, %p100
      %p102 = scmp.ne.s32.totalorder %s91, %s94
      %p103 = scmp.eq.s32.totalorder %s18, 2
      %p104 = por %p102, %p103
      %p105 = scmp.ne.s32.totalorder %s94, %s95
      %p106 = scmp.eq.s32.totalorder %s18, 0
      %p107 = por %p105, %p106
      %p108 = scmp.ne.s32.totalorder %s94, %s95
      %p109 = scmp.eq.s32.totalorder %s19, 2
      %p110 = por %p108, %p109
      %p112 = scmp.ne.s32.totalorder %s95, %s111
      %p113 = scmp.eq.s32.totalorder %s19, 0
      %p114 = por %p112, %p113
      %p115 = scmp.le.s32.totalorder 1, %s13
      %p116 = scmp.lt.s32.totalorder %s13, 4
      %p117 = pnand %p115, %p116
      %p118 = pneg %p117
      // Predicated region
      $region9: #{tpu_custom_call.1} parent=5 // pred_check
        _
      $region10: #{tpu_custom_call.1} parent=5 // pred_check_branch
        %120 = sbr.rel (%p117) target = $region12
      $region11: #{tpu_custom_call.1} parent=5 // pred_region
        %s121 = ssub.s32 %s13, 1
        // Predicated region
        $region13: #{tpu_custom_call.1} parent=11 // pred_check
          %p122 = pneg %p34
        $region14: #{tpu_custom_call.1} parent=11 // pred_check_branch
          %124 = sbr.rel (%p122) target = $region16
        $region15: #{tpu_custom_call.1} parent=11 // pred_region
          _
        $region16: #{tpu_custom_call.1} parent=11 // pred_fallthru
          _
        // Predicated region
        $region17: #{tpu_custom_call.1} parent=11 // pred_check
          %p125 = pneg %p81
        $region18: #{tpu_custom_call.1} parent=11 // pred_check_branch
          %127 = sbr.rel (%p125) target = $region20
        $region19: #{tpu_custom_call.1} parent=11 // pred_region
          _
        $region20: #{tpu_custom_call.1} parent=11 // pred_fallthru
          _
      $region12: #{tpu_custom_call.1} parent=5 // pred_fallthru
        _
      %p128 = scmp.lt.s32.totalorder %s13, 3
      // Predicated region
      $region21: #{tpu_custom_call.1} parent=5 // pred_check
        %p129 = pneg %p128
      $region22: #{tpu_custom_call.1} parent=5 // pred_check_branch
        %131 = sbr.rel (%p129) target = $region24
      $region23: #{tpu_custom_call.1} parent=5 // pred_region
        // Predicated region
        $region25: #{tpu_custom_call.1} parent=23 // pred_check
          %p132 = pneg %p54
        $region26: #{tpu_custom_call.1} parent=23 // pred_check_branch
          %134 = sbr.rel (%p132) target = $region28
        $region27: #{tpu_custom_call.1} parent=23 // pred_region
          %s135 = sand.u32 %s44, 1
          %s136 = scalar_lea.sflag [#allocation4], %s135
          %s137 = sand.u32 %s44, 1
          %s138 = smul.addr %s137, 256
          %s139 = scalar_lea.vmem [#allocation3], %s138
          %s140 = smul.u32 32, %s13
          %s141 = ssub.s32 79, %s140
          %p142 = scmp.lt.s32.totalorder %s141, 32
          %s143 = scalar_select %p142, %s141, 32
          %s144 = smul.u32 128, %s143
          %s146 = ssub.s32 4096, %s144
          %147 = vsyncadd %s136, %s146
          %p148 = scmp.ne.s32.totalorder 0, %s144
          %s149 = smul.addr %s140, 128
          %s150 = scalar_lea.hbm %s1, %s149
          %s151 = smul.u32 8, %s143
          %s152 = sshll.u32 %s139, 4
          %s153 = int_to_ptr.vmem [resolvable:$true] %s152
          %s154 = sshll.u32 %s151, 4
          %158 = dma.hbm_to_vmem [thread:$0]  (%p148), %s150, %s154, %s153, %s136, 128, 128, 8
        $region28: #{tpu_custom_call.1} parent=23 // pred_fallthru
          _
      $region24: #{tpu_custom_call.1} parent=5 // pred_fallthru
        _
      %p159 = scmp.le.s32.totalorder 1, %s13
      %p160 = scmp.lt.s32.totalorder %s13, 4
      %p161 = pnand %p159, %p160
      %p162 = pneg %p161
      // Predicated region
      $region29: #{tpu_custom_call.1} parent=5 // pred_check
        _
      $region30: #{tpu_custom_call.1} parent=5 // pred_check_branch
        %164 = sbr.rel (%p161) target = $region32
      $region31: #{tpu_custom_call.1} parent=5 // pred_region
        %s165 = ssub.s32 %s13, 1
        %s166 = sand.u32 %s47, 1
        %s167 = scalar_lea.sflag [#allocation4], %s166
        %s168 = sand.u32 %s47, 1
        %s169 = smul.addr %s168, 256
        %s170 = scalar_lea.vmem [#allocation3], %s169
        // Predicated region
        $region33: #{tpu_custom_call.1} parent=31 // pred_check
          %p171 = pneg %p60
        $region34: #{tpu_custom_call.1} parent=31 // pred_check_branch
          %173 = sbr.rel (%p171) target = $region36
        $region35: #{tpu_custom_call.1} parent=31 // pred_region
          %174 = dma.done %s167, 4096
        $region36: #{tpu_custom_call.1} parent=31 // pred_fallthru
          _
        %p175 = pneg %p34
        %p176 = pneg %p31
        %s177 = sand.u32 %s47, 1
        %s178 = scalar_lea.sflag [#allocation4], %s177
        %s179 = sand.u32 %s47, 1
        %s180 = smul.addr %s179, 256
        %s181 = scalar_lea.vmem [#allocation3], %s180
        %p182 = pneg %p60
        %p183 = pneg %p57
        %p184 = pneg %p81
        %p185 = pneg %p78
        %p186 = pneg %p107
        %p187 = pneg %p104
        %s188 = sand.u32 %s94, 1
        %s189 = sand.u32 %s94, 1
        %s190 = smul.addr %s189, 256
        %s191 = scalar_lea.vmem [#allocation5], %s190
        %s192 = smul.u32 32, %s18
        %s193 = ssub.s32 79, %s192
        %p194 = scmp.lt.s32.totalorder %s193, 32
        %s195 = scalar_select %p194, %s193, 32
        %s196 = smul.u32 128, %s195
        %s197 = smul.u32 32, %s18
        %s198 = ssub.s32 79, %s197
        %p199 = scmp.lt.s32.totalorder %s198, 32
        %s200 = scalar_select %p199, %s198, 32
        %s201 = smul.u32 128, %s200
        %v202 = vld [vmem:[%s170] sm:$0xff]
        %v203 = vld [vmem:[%s170 + $0x8] sm:$0xff]
        %v204 = vld [vmem:[%s170 + $0x10] sm:$0xff]
        %v205 = vld [vmem:[%s170 + $0x18] sm:$0xff]
        %v206 = vld [vmem:[%s170 + $0x20] sm:$0xff]
        %v207 = vld [vmem:[%s170 + $0x28] sm:$0xff]
        %v208 = vld [vmem:[%s170 + $0x30] sm:$0xff]
        %v209 = vld [vmem:[%s170 + $0x38] sm:$0xff]
        %v210 = vld [vmem:[%s170 + $0x40] sm:$0xff]
        %v211 = vld [vmem:[%s170 + $0x48] sm:$0xff]
        %v212 = vld [vmem:[%s170 + $0x50] sm:$0xff]
        %v213 = vld [vmem:[%s170 + $0x58] sm:$0xff]
        %v214 = vld [vmem:[%s170 + $0x60] sm:$0xff]
        %v215 = vld [vmem:[%s170 + $0x68] sm:$0xff]
        %v216 = vld [vmem:[%s170 + $0x70] sm:$0xff]
        %v217 = vld [vmem:[%s170 + $0x78] sm:$0xff]
        %v218 = vld [vmem:[%s170 + $0x80] sm:$0xff]
        %v219 = vld [vmem:[%s170 + $0x88] sm:$0xff]
        %v220 = vld [vmem:[%s170 + $0x90] sm:$0xff]
        %v221 = vld [vmem:[%s170 + $0x98] sm:$0xff]
        %v222 = vld [vmem:[%s170 + $0xa0] sm:$0xff]
        %v223 = vld [vmem:[%s170 + $0xa8] sm:$0xff]
        %v224 = vld [vmem:[%s170 + $0xb0] sm:$0xff]
        %v225 = vld [vmem:[%s170 + $0xb8] sm:$0xff]
        %v226 = vld [vmem:[%s170 + $0xc0] sm:$0xff]
        %v227 = vld [vmem:[%s170 + $0xc8] sm:$0xff]
        %v228 = vld [vmem:[%s170 + $0xd0] sm:$0xff]
        %v229 = vld [vmem:[%s170 + $0xd8] sm:$0xff]
        %v230 = vld [vmem:[%s170 + $0xe0] sm:$0xff]
        %v231 = vld [vmem:[%s170 + $0xe8] sm:$0xff]
        %v232 = vld [vmem:[%s170 + $0xf0] sm:$0xff]
        %v233 = vld [vmem:[%s170 + $0xf8] sm:$0xff]
        %v234 = vld [vmem:[%s2] sm:$0xff]
        %v235 = vld [vmem:[%s2 + $0x8] sm:$0xff]
        %v236 = vld [vmem:[%s2 + $0x10] sm:$0xff]
        %v237 = vld [vmem:[%s2 + $0x18] sm:$0xff]
        %v238 = vld [vmem:[%s2 + $0x20] sm:$0xff]
        %v239 = vld [vmem:[%s2 + $0x28] sm:$0xff]
        %v240 = vld [vmem:[%s2 + $0x30] sm:$0xff]
        %v241 = vld [vmem:[%s2 + $0x38] sm:$0xff]
        %v242 = vld [vmem:[%s2 + $0x40] sm:$0xff]
        %v243 = vld [vmem:[%s2 + $0x48] sm:$0xff]
        %v244 = vld [vmem:[%s2 + $0x50] sm:$0xff]
        %v245 = vld [vmem:[%s2 + $0x58] sm:$0xff]
        %v246 = vld [vmem:[%s2 + $0x60] sm:$0xff]
        %v247 = vld [vmem:[%s2 + $0x68] sm:$0xff]
        %v248 = vld [vmem:[%s2 + $0x70] sm:$0xff]
        %v249 = vld [vmem:[%s2 + $0x78] sm:$0xff]
        %s250 = sld [smem:[#allocation2]]
        %v251 = vstv %s250
        %252 = vmatprep.subr.mxu0 0.0
        %253 = vmatpush1.msra.mxu0 %v249
        %254 = vmatprep.subr.mxu0 0.0
        %255 = vmatpush1.msra.mxu0 %v248
        %256 = vmatprep.subr.mxu0 0.0
        %257 = vmatpush1.msra.mxu0 %v247
        %258 = vmatprep.subr.mxu0 0.0
        %259 = vmatpush1.msra.mxu0 %v246
        %260 = vmatprep.subr.mxu0 0.0
        %261 = vmatpush1.msra.mxu0 %v245
        %262 = vmatprep.subr.mxu0 0.0
        %263 = vmatpush1.msra.mxu0 %v244
        %264 = vmatprep.subr.mxu0 0.0
        %265 = vmatpush1.msra.mxu0 %v243
        %266 = vmatprep.subr.mxu0 0.0
        %267 = vmatpush1.msra.mxu0 %v242
        %268 = vmatprep.subr.mxu0 0.0
        %269 = vmatpush1.msra.mxu0 %v241
        %270 = vmatprep.subr.mxu0 0.0
        %271 = vmatpush1.msra.mxu0 %v240
        %272 = vmatprep.subr.mxu0 0.0
        %273 = vmatpush1.msra.mxu0 %v239
        %274 = vmatprep.subr.mxu0 0.0
        %275 = vmatpush1.msra.mxu0 %v238
        %276 = vmatprep.subr.mxu0 0.0
        %277 = vmatpush1.msra.mxu0 %v237
        %278 = vmatprep.subr.mxu0 0.0
        %279 = vmatpush1.msra.mxu0 %v236
        %280 = vmatprep.subr.mxu0 0.0
        %281 = vmatpush1.msra.mxu0 %v235
        %282 = vmatprep.subr.mxu0 0.0
        %283 = vmatpush1.msra.mxu0 %v234
        %284 = vmatprep.subr.mxu0 0.0
        %285 = vmatpush2.msra.mxu0 0.0
        %286 = vmatprep.subr.mxu0 0.0
        %287 = vmatpush2.msra.mxu0 0.0
        %288 = vmatprep.subr.mxu0 0.0
        %289 = vmatpush2.msra.mxu0 0.0
        %290 = vmatprep.subr.mxu0 0.0
        %291 = vmatpush2.msra.mxu0 0.0
        %292 = vmatprep.subr.mxu0 0.0
        %293 = vmatpush2.msra.mxu0 0.0
        %294 = vmatprep.subr.mxu0 0.0
        %295 = vmatpush2.msra.mxu0 0.0
        %296 = vmatprep.subr.mxu0 0.0
        %297 = vmatpush2.msra.mxu0 0.0
        %298 = vmatprep.subr.mxu0 0.0
        %299 = vmatpush2.msra.mxu0 0.0
        %300 = vmatprep.subr.mxu0 0.0
        %301 = vmatpush2.msra.mxu0 0.0
        %302 = vmatprep.subr.mxu0 0.0
        %303 = vmatpush2.msra.mxu0 0.0
        %304 = vmatprep.subr.mxu0 0.0
        %305 = vmatpush2.msra.mxu0 0.0
        %306 = vmatprep.subr.mxu0 0.0
        %307 = vmatpush2.msra.mxu0 0.0
        %308 = vmatprep.subr.mxu0 0.0
        %309 = vmatpush2.msra.mxu0 0.0
        %310 = vmatprep.subr.mxu0 0.0
        %311 = vmatpush2.msra.mxu0 0.0
        %312 = vmatprep.subr.mxu0 0.0
        %313 = vmatpush2.msra.mxu0 0.0
        %314 = vmatprep.subr.mxu0 0.0
        %315 = vmatpush2.msra.mxu0 0.0
        %316 = vmatprep.mubr.f32.mxu0 0.0
        %317 = vmatmul.mubr.f32.gmra.mxu0 %v202
        %v318 = vpop.f32.mrf.mxu0
        %v319 = vadd.f32 %v251, %v318
        %v320 = vpop.f32.mrf.mxu0
        %321 = vmatprep.mubr.f32.mxu0 0.0
        %322 = vmatmul.mubr.f32.gmra.mxu0 %v203
        %v323 = vpop.f32.mrf.mxu0
        %v324 = vadd.f32 %v251, %v323
        %v325 = vpop.f32.mrf.mxu0
        %326 = vmatprep.mubr.f32.mxu0 0.0
        %327 = vmatmul.mubr.f32.gmra.mxu0 %v204
        %v328 = vpop.f32.mrf.mxu0
        %v329 = vadd.f32 %v251, %v328
        %v330 = vpop.f32.mrf.mxu0
        %331 = vmatprep.mubr.f32.mxu0 0.0
        %332 = vmatmul.mubr.f32.gmra.mxu0 %v205
        %v333 = vpop.f32.mrf.mxu0
        %v334 = vadd.f32 %v251, %v333
        %v335 = vpop.f32.mrf.mxu0
        %336 = vmatprep.mubr.f32.mxu0 0.0
        %337 = vmatmul.mubr.f32.gmra.mxu0 %v206
        %v338 = vpop.f32.mrf.mxu0
        %v339 = vadd.f32 %v251, %v338
        %v340 = vpop.f32.mrf.mxu0
        %341 = vmatprep.mubr.f32.mxu0 0.0
        %342 = vmatmul.mubr.f32.gmra.mxu0 %v207
        %v343 = vpop.f32.mrf.mxu0
        %v344 = vadd.f32 %v251, %v343
        %v345 = vpop.f32.mrf.mxu0
        %346 = vmatprep.mubr.f32.mxu0 0.0
        %347 = vmatmul.mubr.f32.gmra.mxu0 %v208
        %v348 = vpop.f32.mrf.mxu0
        %v349 = vadd.f32 %v251, %v348
        %v350 = vpop.f32.mrf.mxu0
        %351 = vmatprep.mubr.f32.mxu0 0.0
        %352 = vmatmul.mubr.f32.gmra.mxu0 %v209
        %v353 = vpop.f32.mrf.mxu0
        %v354 = vadd.f32 %v251, %v353
        %v355 = vpop.f32.mrf.mxu0
        %356 = vmatprep.mubr.f32.mxu0 0.0
        %357 = vmatmul.mubr.f32.gmra.mxu0 %v210
        %v358 = vpop.f32.mrf.mxu0
        %v359 = vadd.f32 %v251, %v358
        %v360 = vpop.f32.mrf.mxu0
        %361 = vmatprep.mubr.f32.mxu0 0.0
        %362 = vmatmul.mubr.f32.gmra.mxu0 %v211
        %v363 = vpop.f32.mrf.mxu0
        %v364 = vadd.f32 %v251, %v363
        %v365 = vpop.f32.mrf.mxu0
        %366 = vmatprep.mubr.f32.mxu0 0.0
        %367 = vmatmul.mubr.f32.gmra.mxu0 %v212
        %v368 = vpop.f32.mrf.mxu0
        %v369 = vadd.f32 %v251, %v368
        %v370 = vpop.f32.mrf.mxu0
        %371 = vmatprep.mubr.f32.mxu0 0.0
        %372 = vmatmul.mubr.f32.gmra.mxu0 %v213
        %v373 = vpop.f32.mrf.mxu0
        %v374 = vadd.f32 %v251, %v373
        %v375 = vpop.f32.mrf.mxu0
        %376 = vmatprep.mubr.f32.mxu0 0.0
        %377 = vmatmul.mubr.f32.gmra.mxu0 %v214
        %v378 = vpop.f32.mrf.mxu0
        %v379 = vadd.f32 %v251, %v378
        %v380 = vpop.f32.mrf.mxu0
        %381 = vmatprep.mubr.f32.mxu0 0.0
        %382 = vmatmul.mubr.f32.gmra.mxu0 %v215
        %v383 = vpop.f32.mrf.mxu0
        %v384 = vadd.f32 %v251, %v383
        %v385 = vpop.f32.mrf.mxu0
        %386 = vmatprep.mubr.f32.mxu0 0.0
        %387 = vmatmul.mubr.f32.gmra.mxu0 %v216
        %v388 = vpop.f32.mrf.mxu0
        %v389 = vadd.f32 %v251, %v388
        %v390 = vpop.f32.mrf.mxu0
        %391 = vmatprep.mubr.f32.mxu0 0.0
        %392 = vmatmul.mubr.f32.gmra.mxu0 %v217
        %v393 = vpop.f32.mrf.mxu0
        %v394 = vadd.f32 %v251, %v393
        %v395 = vpop.f32.mrf.mxu0
        %396 = vmatprep.mubr.f32.mxu0 0.0
        %397 = vmatmul.mubr.f32.gmra.mxu0 %v218
        %v398 = vpop.f32.mrf.mxu0
        %v399 = vadd.f32 %v251, %v398
        %v400 = vpop.f32.mrf.mxu0
        %401 = vmatprep.mubr.f32.mxu0 0.0
        %402 = vmatmul.mubr.f32.gmra.mxu0 %v219
        %v403 = vpop.f32.mrf.mxu0
        %v404 = vadd.f32 %v251, %v403
        %v405 = vpop.f32.mrf.mxu0
        %406 = vmatprep.mubr.f32.mxu0 0.0
        %407 = vmatmul.mubr.f32.gmra.mxu0 %v220
        %v408 = vpop.f32.mrf.mxu0
        %v409 = vadd.f32 %v251, %v408
        %v410 = vpop.f32.mrf.mxu0
        %411 = vmatprep.mubr.f32.mxu0 0.0
        %412 = vmatmul.mubr.f32.gmra.mxu0 %v221
        %v413 = vpop.f32.mrf.mxu0
        %v414 = vadd.f32 %v251, %v413
        %v415 = vpop.f32.mrf.mxu0
        %416 = vmatprep.mubr.f32.mxu0 0.0
        %417 = vmatmul.mubr.f32.gmra.mxu0 %v222
        %v418 = vpop.f32.mrf.mxu0
        %v419 = vadd.f32 %v251, %v418
        %v420 = vpop.f32.mrf.mxu0
        %421 = vmatprep.mubr.f32.mxu0 0.0
        %422 = vmatmul.mubr.f32.gmra.mxu0 %v223
        %v423 = vpop.f32.mrf.mxu0
        %v424 = vadd.f32 %v251, %v423
        %v425 = vpop.f32.mrf.mxu0
        %426 = vmatprep.mubr.f32.mxu0 0.0
        %427 = vmatmul.mubr.f32.gmra.mxu0 %v224
        %v428 = vpop.f32.mrf.mxu0
        %v429 = vadd.f32 %v251, %v428
        %v430 = vpop.f32.mrf.mxu0
        %431 = vmatprep.mubr.f32.mxu0 0.0
        %432 = vmatmul.mubr.f32.gmra.mxu0 %v225
        %v433 = vpop.f32.mrf.mxu0
        %v434 = vadd.f32 %v251, %v433
        %v435 = vpop.f32.mrf.mxu0
        %436 = vmatprep.mubr.f32.mxu0 0.0
        %437 = vmatmul.mubr.f32.gmra.mxu0 %v226
        %v438 = vpop.f32.mrf.mxu0
        %v439 = vadd.f32 %v251, %v438
        %v440 = vpop.f32.mrf.mxu0
        %441 = vmatprep.mubr.f32.mxu0 0.0
        %442 = vmatmul.mubr.f32.gmra.mxu0 %v227
        %v443 = vpop.f32.mrf.mxu0
        %v444 = vadd.f32 %v251, %v443
        %v445 = vpop.f32.mrf.mxu0
        %446 = vmatprep.mubr.f32.mxu0 0.0
        %447 = vmatmul.mubr.f32.gmra.mxu0 %v228
        %v448 = vpop.f32.mrf.mxu0
        %v449 = vadd.f32 %v251, %v448
        %v450 = vpop.f32.mrf.mxu0
        %451 = vmatprep.mubr.f32.mxu0 0.0
        %452 = vmatmul.mubr.f32.gmra.mxu0 %v229
        %v453 = vpop.f32.mrf.mxu0
        %v454 = vadd.f32 %v251, %v453
        %v455 = vpop.f32.mrf.mxu0
        %456 = vmatprep.mubr.f32.mxu0 0.0
        %457 = vmatmul.mubr.f32.gmra.mxu0 %v230
        %v458 = vpop.f32.mrf.mxu0
        %v459 = vadd.f32 %v251, %v458
        %v460 = vpop.f32.mrf.mxu0
        %461 = vmatprep.mubr.f32.mxu0 0.0
        %462 = vmatmul.mubr.f32.gmra.mxu0 %v231
        %v463 = vpop.f32.mrf.mxu0
        %v464 = vadd.f32 %v251, %v463
        %v465 = vpop.f32.mrf.mxu0
        %466 = vmatprep.mubr.f32.mxu0 0.0
        %467 = vmatmul.mubr.f32.gmra.mxu0 %v232
        %v468 = vpop.f32.mrf.mxu0
        %v469 = vadd.f32 %v251, %v468
        %v470 = vpop.f32.mrf.mxu0
        %471 = vmatprep.mubr.f32.mxu0 0.0
        %472 = vmatmul.mubr.f32.gmra.mxu0 %v233
        %v473 = vpop.f32.mrf.mxu0
        %v474 = vadd.f32 %v251, %v473
        %v475 = vpop.f32.mrf.mxu0
        %476 = vdwg.mxu0
        %vm477 = vcmask 261120
        %478 = vst.msk [vmem:[%s191] sm:$0xff] %vm477, %v319
        %479 = vst.msk [vmem:[%s191 + $0x8] sm:$0xff] %vm477, %v324
        %480 = vst.msk [vmem:[%s191 + $0x10] sm:$0xff] %vm477, %v329
        %481 = vst.msk [vmem:[%s191 + $0x18] sm:$0xff] %vm477, %v334
        %482 = vst.msk [vmem:[%s191 + $0x20] sm:$0xff] %vm477, %v339
        %483 = vst.msk [vmem:[%s191 + $0x28] sm:$0xff] %vm477, %v344
        %484 = vst.msk [vmem:[%s191 + $0x30] sm:$0xff] %vm477, %v349
        %485 = vst.msk [vmem:[%s191 + $0x38] sm:$0xff] %vm477, %v354
        %486 = vst.msk [vmem:[%s191 + $0x40] sm:$0xff] %vm477, %v359
        %487 = vst.msk [vmem:[%s191 + $0x48] sm:$0xff] %vm477, %v364
        %488 = vst.msk [vmem:[%s191 + $0x50] sm:$0xff] %vm477, %v369
        %489 = vst.msk [vmem:[%s191 + $0x58] sm:$0xff] %vm477, %v374
        %490 = vst.msk [vmem:[%s191 + $0x60] sm:$0xff] %vm477, %v379
        %491 = vst.msk [vmem:[%s191 + $0x68] sm:$0xff] %vm477, %v384
        %492 = vst.msk [vmem:[%s191 + $0x70] sm:$0xff] %vm477, %v389
        %493 = vst.msk [vmem:[%s191 + $0x78] sm:$0xff] %vm477, %v394
        %494 = vst.msk [vmem:[%s191 + $0x80] sm:$0xff] %vm477, %v399
        %495 = vst.msk [vmem:[%s191 + $0x88] sm:$0xff] %vm477, %v404
        %496 = vst.msk [vmem:[%s191 + $0x90] sm:$0xff] %vm477, %v409
        %497 = vst.msk [vmem:[%s191 + $0x98] sm:$0xff] %vm477, %v414
        %498 = vst.msk [vmem:[%s191 + $0xa0] sm:$0xff] %vm477, %v419
        %499 = vst.msk [vmem:[%s191 + $0xa8] sm:$0xff] %vm477, %v424
        %500 = vst.msk [vmem:[%s191 + $0xb0] sm:$0xff] %vm477, %v429
        %501 = vst.msk [vmem:[%s191 + $0xb8] sm:$0xff] %vm477, %v434
        %502 = vst.msk [vmem:[%s191 + $0xc0] sm:$0xff] %vm477, %v439
        %503 = vst.msk [vmem:[%s191 + $0xc8] sm:$0xff] %vm477, %v444
        %504 = vst.msk [vmem:[%s191 + $0xd0] sm:$0xff] %vm477, %v449
        %505 = vst.msk [vmem:[%s191 + $0xd8] sm:$0xff] %vm477, %v454
        %506 = vst.msk [vmem:[%s191 + $0xe0] sm:$0xff] %vm477, %v459
        %507 = vst.msk [vmem:[%s191 + $0xe8] sm:$0xff] %vm477, %v464
        %508 = vst.msk [vmem:[%s191 + $0xf0] sm:$0xff] %vm477, %v469
        %509 = vst.msk [vmem:[%s191 + $0xf8] sm:$0xff] %vm477, %v474
        %s510 = sand.u32 %s94, 1
        %s511 = sand.u32 %s94, 1
        %s512 = smul.addr %s511, 256
        %s513 = scalar_lea.vmem [#allocation5], %s512
        // Predicated region
        $region37: #{tpu_custom_call.1} parent=31 // pred_check
          %p514 = pneg %p104
        $region38: #{tpu_custom_call.1} parent=31 // pred_check_branch
          %516 = sbr.rel (%p514) target = $region40
        $region39: #{tpu_custom_call.1} parent=31 // pred_region
          %s517 = smul.u32 32, %s18
          %s518 = ssub.s32 79, %s517
          %p519 = scmp.lt.s32.totalorder %s518, 32
          %s520 = scalar_select %p519, %s518, 32
          %s521 = smul.u32 128, %s520
          %p522 = scmp.ne.s32.totalorder 0, %s521
          %s523 = smul.addr %s517, 8
          %s524 = scalar_lea.vmem %s3, %s523
          // Predicated region
          $region41: #{tpu_custom_call.1} parent=39 // pred_check
            %p525 = pneg %p522
          $region42: #{tpu_custom_call.1} parent=39 // pred_check_branch
            %527 = sbr.rel (%p525) target = $region44
          $region43: #{tpu_custom_call.1} parent=39 // pred_region
            // Predicated region
            $region45: #{tpu_custom_call.1} parent=43 // pred_check
              _
            $region46: #{tpu_custom_call.1} parent=43 // pred_check_branch
              %529 = sbr.rel (0) target = $region48
            $region47: #{tpu_custom_call.1} parent=43 // pred_region
              // Predicated region
              $region67: #{tpu_custom_call.1} parent=47 // pred_check
                _
              $region68: #{tpu_custom_call.1} parent=47 // pred_check_branch
                %641 = sbr.rel (0) target = $region70
              $region69: #{tpu_custom_call.1} parent=47 // pred_region
                %s642 = sshrl.u32 %s520, 5
                // While loop
                $region71: #{tpu_custom_call.1} parent=69 // loop_pre_header
                  _
                $region72: #{tpu_custom_call.1} parent=69 // loop_header
                  %s644 = sphi 0, %s646
                  %p645 = scmp.ge.s32.totalorder %s644, %s642
                  %s649 = sphi 0, %s718
                  %s650 = sphi %s513, %s721
                  %s651 = sphi %s524, %s722
                $region73: #{tpu_custom_call.1} parent=69 // loop_header_branch
                  %648 = sbr.rel (%p645) target = $region77
                $region74: #{tpu_custom_call.1} parent=69 // loop_body
                  %v652 = vld [vmem:[%s650] sm:$0xff]
                  %653 = vst [vmem:[%s651] sm:$0xff] %v652
                  %v654 = vld [vmem:[%s650 + $0x8] sm:$0xff]
                  %655 = vst [vmem:[%s651 + $0x8] sm:$0xff] %v654
                  %v656 = vld [vmem:[%s650 + $0x10] sm:$0xff]
                  %657 = vst [vmem:[%s651 + $0x10] sm:$0xff] %v656
                  %v658 = vld [vmem:[%s650 + $0x18] sm:$0xff]
                  %659 = vst [vmem:[%s651 + $0x18] sm:$0xff] %v658
                  %v660 = vld [vmem:[%s650 + $0x20] sm:$0xff]
                  %661 = vst [vmem:[%s651 + $0x20] sm:$0xff] %v660
                  %v662 = vld [vmem:[%s650 + $0x28] sm:$0xff]
                  %663 = vst [vmem:[%s651 + $0x28] sm:$0xff] %v662
                  %v664 = vld [vmem:[%s650 + $0x30] sm:$0xff]
                  %665 = vst [vmem:[%s651 + $0x30] sm:$0xff] %v664
                  %v666 = vld [vmem:[%s650 + $0x38] sm:$0xff]
                  %667 = vst [vmem:[%s651 + $0x38] sm:$0xff] %v666
                  %v668 = vld [vmem:[%s650 + $0x40] sm:$0xff]
                  %669 = vst [vmem:[%s651 + $0x40] sm:$0xff] %v668
                  %v670 = vld [vmem:[%s650 + $0x48] sm:$0xff]
                  %671 = vst [vmem:[%s651 + $0x48] sm:$0xff] %v670
                  %v672 = vld [vmem:[%s650 + $0x50] sm:$0xff]
                  %673 = vst [vmem:[%s651 + $0x50] sm:$0xff] %v672
                  %v674 = vld [vmem:[%s650 + $0x58] sm:$0xff]
                  %675 = vst [vmem:[%s651 + $0x58] sm:$0xff] %v674
                  %v676 = vld [vmem:[%s650 + $0x60] sm:$0xff]
                  %677 = vst [vmem:[%s651 + $0x60] sm:$0xff] %v676
                  %v678 = vld [vmem:[%s650 + $0x68] sm:$0xff]
                  %679 = vst [vmem:[%s651 + $0x68] sm:$0xff] %v678
                  %v680 = vld [vmem:[%s650 + $0x70] sm:$0xff]
                  %681 = vst [vmem:[%s651 + $0x70] sm:$0xff] %v680
                  %v682 = vld [vmem:[%s650 + $0x78] sm:$0xff]
                  %683 = vst [vmem:[%s651 + $0x78] sm:$0xff] %v682
                  %v684 = vld [vmem:[%s650 + $0x80] sm:$0xff]
                  %685 = vst [vmem:[%s651 + $0x80] sm:$0xff] %v684
                  %v686 = vld [vmem:[%s650 + $0x88] sm:$0xff]
                  %687 = vst [vmem:[%s651 + $0x88] sm:$0xff] %v686
                  %v688 = vld [vmem:[%s650 + $0x90] sm:$0xff]
                  %689 = vst [vmem:[%s651 + $0x90] sm:$0xff] %v688
                  %v690 = vld [vmem:[%s650 + $0x98] sm:$0xff]
                  %691 = vst [vmem:[%s651 + $0x98] sm:$0xff] %v690
                  %v692 = vld [vmem:[%s650 + $0xa0] sm:$0xff]
                  %693 = vst [vmem:[%s651 + $0xa0] sm:$0xff] %v692
                  %v694 = vld [vmem:[%s650 + $0xa8] sm:$0xff]
                  %695 = vst [vmem:[%s651 + $0xa8] sm:$0xff] %v694
                  %v696 = vld [vmem:[%s650 + $0xb0] sm:$0xff]
                  %697 = vst [vmem:[%s651 + $0xb0] sm:$0xff] %v696
                  %v698 = vld [vmem:[%s650 + $0xb8] sm:$0xff]
                  %699 = vst [vmem:[%s651 + $0xb8] sm:$0xff] %v698
                  %v700 = vld [vmem:[%s650 + $0xc0] sm:$0xff]
                  %701 = vst [vmem:[%s651 + $0xc0] sm:$0xff] %v700
                  %v702 = vld [vmem:[%s650 + $0xc8] sm:$0xff]
                  %703 = vst [vmem:[%s651 + $0xc8] sm:$0xff] %v702
                  %v704 = vld [vmem:[%s650 + $0xd0] sm:$0xff]
                  %705 = vst [vmem:[%s651 + $0xd0] sm:$0xff] %v704
                  %v706 = vld [vmem:[%s650 + $0xd8] sm:$0xff]
                  %707 = vst [vmem:[%s651 + $0xd8] sm:$0xff] %v706
                  %v708 = vld [vmem:[%s650 + $0xe0] sm:$0xff]
                  %709 = vst [vmem:[%s651 + $0xe0] sm:$0xff] %v708
                  %v710 = vld [vmem:[%s650 + $0xe8] sm:$0xff]
                  %711 = vst [vmem:[%s651 + $0xe8] sm:$0xff] %v710
                  %v712 = vld [vmem:[%s650 + $0xf0] sm:$0xff]
                  %713 = vst [vmem:[%s651 + $0xf0] sm:$0xff] %v712
                  %v714 = vld [vmem:[%s650 + $0xf8] sm:$0xff]
                  %715 = vst [vmem:[%s651 + $0xf8] sm:$0xff] %v714
                  %s716 = sadd.s32 1, %s649
                  %p717 = scmp.ge.s32.totalorder %s716, %s642
                  %s718 = scalar_select %p717, 0, %s716
                  %s719 = smul.u32 %s718, 256
                  %s720 = smul.u32 %s718, 256
                  %s721 = scalar_lea.vmem %s513, %s719 [#allocation5]
                  %s722 = scalar_lea.vmem %s524, %s720
                $region75: #{tpu_custom_call.1} parent=69 // loop_footer
                  %s646 = sadd.s32 %s644, 1
                $region76: #{tpu_custom_call.1} parent=69 // loop_footer_branch
                  %643 = sbr.rel target = $region72
                $region77: #{tpu_custom_call.1} parent=69 // loop_exit
                  _
                %s723 = sshrl.u32 %s520, 5
                %s724 = sand.u32 %s520, 31
                %s725 = smul.u32 %s723, 32
                %s726 = smul.u32 8, %s725
                %s727 = scalar_lea.vmem %s513, %s726 [#allocation5]
                %s728 = smul.u32 8, %s725
                %s729 = scalar_lea.vmem %s524, %s728
                // While loop
                $region78: #{tpu_custom_call.1} parent=69 // loop_pre_header
                  _
                $region79: #{tpu_custom_call.1} parent=69 // loop_header
                  %s731 = sphi 0, %s733
                  %p732 = scmp.ge.s32.totalorder %s731, %s724
                  %s736 = sphi 0, %s743
                  %s737 = sphi %s727, %s746
                  %s738 = sphi %s729, %s747
                $region80: #{tpu_custom_call.1} parent=69 // loop_header_branch
                  %735 = sbr.rel (%p732) target = $region84
                $region81: #{tpu_custom_call.1} parent=69 // loop_body
                  %v739 = vld [vmem:[%s737] sm:$0xff]
                  %740 = vst [vmem:[%s738] sm:$0xff] %v739
                  %s741 = sadd.s32 1, %s736
                  %p742 = scmp.ge.s32.totalorder %s741, %s724
                  %s743 = scalar_select %p742, 0, %s741
                  %s744 = smul.u32 %s743, 8
                  %s745 = smul.u32 %s743, 8
                  %s746 = scalar_lea.vmem %s727, %s744 [#allocation5]
                  %s747 = scalar_lea.vmem %s729, %s745
                $region82: #{tpu_custom_call.1} parent=69 // loop_footer
                  %s733 = sadd.s32 %s731, 1
                $region83: #{tpu_custom_call.1} parent=69 // loop_footer_branch
                  %730 = sbr.rel target = $region79
                $region84: #{tpu_custom_call.1} parent=69 // loop_exit
                  _
              $region70: #{tpu_custom_call.1} parent=47 // pred_fallthru
                _
              // Predicated region
              $region85: #{tpu_custom_call.1} parent=47 // pred_check
                _
              $region86: #{tpu_custom_call.1} parent=47 // pred_check_branch
                %749 = sbr.rel target = $region88
              $region87: #{tpu_custom_call.1} parent=47 // pred_region
                _
              $region88: #{tpu_custom_call.1} parent=47 // pred_fallthru
                _
            $region48: #{tpu_custom_call.1} parent=43 // pred_fallthru
              _
            // Predicated region
            $region49: #{tpu_custom_call.1} parent=43 // pred_check
              _
            $region50: #{tpu_custom_call.1} parent=43 // pred_check_branch
              %531 = sbr.rel target = $region52
            $region51: #{tpu_custom_call.1} parent=43 // pred_region
              %s533 = ssub.s32 256, 1
              %s534 = sshrl.u32 %s520, 5
              // While loop
              $region53: #{tpu_custom_call.1} parent=51 // loop_pre_header
                _
              $region54: #{tpu_custom_call.1} parent=51 // loop_header
                %s536 = sphi 0, %s538
                %p537 = scmp.ge.s32.totalorder %s536, %s534
                %s541 = sphi 0, %s610
                %s542 = sphi %s513, %s613
                %s543 = sphi %s524, %s614
              $region55: #{tpu_custom_call.1} parent=51 // loop_header_branch
                %540 = sbr.rel (%p537) target = $region59
              $region56: #{tpu_custom_call.1} parent=51 // loop_body
                %v544 = vld [vmem:[%s542] sm:%s533]
                %545 = vst [vmem:[%s543] sm:%s533] %v544
                %v546 = vld [vmem:[%s542 + $0x8] sm:%s533]
                %547 = vst [vmem:[%s543 + $0x8] sm:%s533] %v546
                %v548 = vld [vmem:[%s542 + $0x10] sm:%s533]
                %549 = vst [vmem:[%s543 + $0x10] sm:%s533] %v548
                %v550 = vld [vmem:[%s542 + $0x18] sm:%s533]
                %551 = vst [vmem:[%s543 + $0x18] sm:%s533] %v550
                %v552 = vld [vmem:[%s542 + $0x20] sm:%s533]
                %553 = vst [vmem:[%s543 + $0x20] sm:%s533] %v552
                %v554 = vld [vmem:[%s542 + $0x28] sm:%s533]
                %555 = vst [vmem:[%s543 + $0x28] sm:%s533] %v554
                %v556 = vld [vmem:[%s542 + $0x30] sm:%s533]
                %557 = vst [vmem:[%s543 + $0x30] sm:%s533] %v556
                %v558 = vld [vmem:[%s542 + $0x38] sm:%s533]
                %559 = vst [vmem:[%s543 + $0x38] sm:%s533] %v558
                %v560 = vld [vmem:[%s542 + $0x40] sm:%s533]
                %561 = vst [vmem:[%s543 + $0x40] sm:%s533] %v560
                %v562 = vld [vmem:[%s542 + $0x48] sm:%s533]
                %563 = vst [vmem:[%s543 + $0x48] sm:%s533] %v562
                %v564 = vld [vmem:[%s542 + $0x50] sm:%s533]
                %565 = vst [vmem:[%s543 + $0x50] sm:%s533] %v564
                %v566 = vld [vmem:[%s542 + $0x58] sm:%s533]
                %567 = vst [vmem:[%s543 + $0x58] sm:%s533] %v566
                %v568 = vld [vmem:[%s542 + $0x60] sm:%s533]
                %569 = vst [vmem:[%s543 + $0x60] sm:%s533] %v568
                %v570 = vld [vmem:[%s542 + $0x68] sm:%s533]
                %571 = vst [vmem:[%s543 + $0x68] sm:%s533] %v570
                %v572 = vld [vmem:[%s542 + $0x70] sm:%s533]
                %573 = vst [vmem:[%s543 + $0x70] sm:%s533] %v572
                %v574 = vld [vmem:[%s542 + $0x78] sm:%s533]
                %575 = vst [vmem:[%s543 + $0x78] sm:%s533] %v574
                %v576 = vld [vmem:[%s542 + $0x80] sm:%s533]
                %577 = vst [vmem:[%s543 + $0x80] sm:%s533] %v576
                %v578 = vld [vmem:[%s542 + $0x88] sm:%s533]
                %579 = vst [vmem:[%s543 + $0x88] sm:%s533] %v578
                %v580 = vld [vmem:[%s542 + $0x90] sm:%s533]
                %581 = vst [vmem:[%s543 + $0x90] sm:%s533] %v580
                %v582 = vld [vmem:[%s542 + $0x98] sm:%s533]
                %583 = vst [vmem:[%s543 + $0x98] sm:%s533] %v582
                %v584 = vld [vmem:[%s542 + $0xa0] sm:%s533]
                %585 = vst [vmem:[%s543 + $0xa0] sm:%s533] %v584
                %v586 = vld [vmem:[%s542 + $0xa8] sm:%s533]
                %587 = vst [vmem:[%s543 + $0xa8] sm:%s533] %v586
                %v588 = vld [vmem:[%s542 + $0xb0] sm:%s533]
                %589 = vst [vmem:[%s543 + $0xb0] sm:%s533] %v588
                %v590 = vld [vmem:[%s542 + $0xb8] sm:%s533]
                %591 = vst [vmem:[%s543 + $0xb8] sm:%s533] %v590
                %v592 = vld [vmem:[%s542 + $0xc0] sm:%s533]
                %593 = vst [vmem:[%s543 + $0xc0] sm:%s533] %v592
                %v594 = vld [vmem:[%s542 + $0xc8] sm:%s533]
                %595 = vst [vmem:[%s543 + $0xc8] sm:%s533] %v594
                %v596 = vld [vmem:[%s542 + $0xd0] sm:%s533]
                %597 = vst [vmem:[%s543 + $0xd0] sm:%s533] %v596
                %v598 = vld [vmem:[%s542 + $0xd8] sm:%s533]
                %599 = vst [vmem:[%s543 + $0xd8] sm:%s533] %v598
                %v600 = vld [vmem:[%s542 + $0xe0] sm:%s533]
                %601 = vst [vmem:[%s543 + $0xe0] sm:%s533] %v600
                %v602 = vld [vmem:[%s542 + $0xe8] sm:%s533]
                %603 = vst [vmem:[%s543 + $0xe8] sm:%s533] %v602
                %v604 = vld [vmem:[%s542 + $0xf0] sm:%s533]
                %605 = vst [vmem:[%s543 + $0xf0] sm:%s533] %v604
                %v606 = vld [vmem:[%s542 + $0xf8] sm:%s533]
                %607 = vst [vmem:[%s543 + $0xf8] sm:%s533] %v606
                %s608 = sadd.s32 1, %s541
                %p609 = scmp.ge.s32.totalorder %s608, %s534
                %s610 = scalar_select %p609, 0, %s608
                %s611 = smul.u32 %s610, 256
                %s612 = smul.u32 %s610, 256
                %s613 = scalar_lea.vmem %s513, %s611 [#allocation5]
                %s614 = scalar_lea.vmem %s524, %s612
              $region57: #{tpu_custom_call.1} parent=51 // loop_footer
                %s538 = sadd.s32 %s536, 1
              $region58: #{tpu_custom_call.1} parent=51 // loop_footer_branch
                %535 = sbr.rel target = $region54
              $region59: #{tpu_custom_call.1} parent=51 // loop_exit
                _
              %s615 = sshrl.u32 %s520, 5
              %s616 = sand.u32 %s520, 31
              %s617 = smul.u32 %s615, 32
              %s618 = smul.u32 8, %s617
              %s619 = scalar_lea.vmem %s513, %s618 [#allocation5]
              %s620 = smul.u32 8, %s617
              %s621 = scalar_lea.vmem %s524, %s620
              // While loop
              $region60: #{tpu_custom_call.1} parent=51 // loop_pre_header
                _
              $region61: #{tpu_custom_call.1} parent=51 // loop_header
                %s623 = sphi 0, %s625
                %p624 = scmp.ge.s32.totalorder %s623, %s616
                %s628 = sphi 0, %s635
                %s629 = sphi %s619, %s638
                %s630 = sphi %s621, %s639
              $region62: #{tpu_custom_call.1} parent=51 // loop_header_branch
                %627 = sbr.rel (%p624) target = $region66
              $region63: #{tpu_custom_call.1} parent=51 // loop_body
                %v631 = vld [vmem:[%s629] sm:%s533]
                %632 = vst [vmem:[%s630] sm:%s533] %v631
                %s633 = sadd.s32 1, %s628
                %p634 = scmp.ge.s32.totalorder %s633, %s616
                %s635 = scalar_select %p634, 0, %s633
                %s636 = smul.u32 %s635, 8
                %s637 = smul.u32 %s635, 8
                %s638 = scalar_lea.vmem %s619, %s636 [#allocation5]
                %s639 = scalar_lea.vmem %s621, %s637
              $region64: #{tpu_custom_call.1} parent=51 // loop_footer
                %s625 = sadd.s32 %s623, 1
              $region65: #{tpu_custom_call.1} parent=51 // loop_footer_branch
                %622 = sbr.rel target = $region61
              $region66: #{tpu_custom_call.1} parent=51 // loop_exit
                _
            $region52: #{tpu_custom_call.1} parent=43 // pred_fallthru
              _
          $region44: #{tpu_custom_call.1} parent=39 // pred_fallthru
            _
          %750 = vnop
        $region40: #{tpu_custom_call.1} parent=31 // pred_fallthru
          _
      $region32: #{tpu_custom_call.1} parent=5 // pred_fallthru
        _
      %p751 = scmp.le.s32.totalorder 2, %s13
      // Predicated region
      $region89: #{tpu_custom_call.1} parent=5 // pred_check
        %p752 = pneg %p751
      $region90: #{tpu_custom_call.1} parent=5 // pred_check_branch
        %754 = sbr.rel (%p752) target = $region92
      $region91: #{tpu_custom_call.1} parent=5 // pred_region
        %s755 = ssub.s32 %s13, 2
        // Predicated region
        $region93: #{tpu_custom_call.1} parent=91 // pred_check
          %p756 = pneg %p110
        $region94: #{tpu_custom_call.1} parent=91 // pred_check_branch
          %758 = sbr.rel (%p756) target = $region96
        $region95: #{tpu_custom_call.1} parent=91 // pred_region
          %s759 = sand.u32 %s95, 1
          %s760 = sand.u32 %s95, 1
          %s761 = smul.addr %s760, 256
          %s762 = scalar_lea.vmem [#allocation5], %s761
        $region96: #{tpu_custom_call.1} parent=91 // pred_fallthru
          _
      $region92: #{tpu_custom_call.1} parent=5 // pred_fallthru
        _
    $region6: #{tpu_custom_call.1} parent=1 // loop_footer
      %s17 = sadd.s32 1, %s13
    $region7: #{tpu_custom_call.1} parent=1 // loop_footer_branch
      %12 = sbr.rel target = $region3
    $region8: #{tpu_custom_call.1} parent=1 // loop_exit
      _
    %763 = vsyncpa [#allocation4], 1
    %s764 = scalar_lea.sflag [#allocation4], 1
    %765 = vsyncpa %s764, 1

</llo_original>
